<compile_context>
chip_gen: v7x
topology: tpu7x:2x2x1
jax: 0.10.0
libtpu: 0.0.40
codegen_flags: <defaults>
</compile_context>

<pallas_src>
import math

import jax
import jax.numpy as jnp
from jax import lax
from jax.experimental import pallas as pl
from jax.experimental.pallas import tpu as pltpu

EPS = 1e-5
TOP = 8  # sublane offset of the slab interior (aligned, unmasked interior store)


def _choose_cp(c, w):
    """Per-pixel channel pad so the merged (W*Cp) lane axis is a multiple of 128 when
    that is cheap; correctness never depends on the choice."""
    g = 128 // math.gcd(w, 128)
    cp = ((c + g - 1) // g) * g
    if cp > max(4 * c, 32):
        cp = c
    return cp


def _pad_vec(v, cp):
    v = v.astype(jnp.float32)
    return jnp.pad(v, (0, cp - v.shape[0]))


def _band_weight(w_oihw, W, cpi, cpo):
    """(Cout, Cin, 3, 3) -> (3, W*cpi, W*cpo) bf16 banded weight.

    The kw taps and the width-edge zero padding are folded into the band structure:
    block (wi, wo) of band[kh] is w[kh, kw] iff wi == wo + kw - 1 (else zero)."""
    cout, cin = w_oihw.shape[:2]
    w = jnp.transpose(w_oihw, (2, 3, 1, 0)).astype(jnp.float32)      # (kh, kw, ci, co)
    w = jnp.pad(w, ((0, 0), (0, 0), (0, cpi - cin), (0, cpo - cout)))
    bands = []
    for kh in range(3):
        b = jnp.zeros((W, cpi, W, cpo), jnp.float32)
        for kw in range(3):
            shift = jnp.eye(W, W, k=1 - kw, dtype=jnp.float32)       # wi = wo + kw - 1
            b = b + jnp.einsum("ab,cd->acbd", shift, w[kh, kw])
        bands.append(b.reshape(W * cpi, W * cpo))
    return jnp.stack(bands).astype(jnp.bfloat16)


# ---------------------------------------------------------------------------
# Pallas kernel
# ---------------------------------------------------------------------------
def _conv_body(x_ref, w_ref, y_ref, sum_ref, ssq_ref, xpad_ref, s_ref, b_ref):
    """Per-image step: (optional fused producer BN affine + ReLU) -> bf16 padded slab
    in VMEM -> 3x3 conv as 3 banded MXU matmuls -> conv output + per-(w,c)-lane
    partial BN statistics."""
    H = x_ref.shape[1]

    xv = x_ref[0].astype(jnp.float32)                        # (H, W*Cp_in)
    if s_ref is not None:                                     # fused BN1 + ReLU (conv2)
        xv = jnp.maximum(xv * s_ref[...] + b_ref[...], 0.0)

    # Zero only the two 1-row kh halos (every step: cheap, and megacore-safe even if
    # the "parallel" grid axis is split across TensorCores).  Interior store starts at
    # sublane offset TOP=8 -> aligned, unmasked.  Single f32 -> bf16 cast here.
    zero_row = jnp.zeros((1, xpad_ref.shape[1]), xpad_ref.dtype)
    xpad_ref[TOP - 1:TOP, :] = zero_row
    xpad_ref[TOP + H:TOP + H + 1, :] = zero_row
    xpad_ref[TOP:TOP + H, :] = xv.astype(xpad_ref.dtype)

    # 3x3 conv: kw taps + width zero-padding live in the banded weight's K dimension,
    # so only the 3 kh taps remain.  bf16 operands, f32 accumulation.  The accumulator
    # is (H, W*Cp_out) f32 (a couple of vregs) -> value accumulation is fine.
    acc = jnp.dot(xpad_ref[TOP - 1:TOP - 1 + H, :], w_ref[0],
                  preferred_element_type=jnp.float32)
    acc = acc + jnp.dot(xpad_ref[TOP:TOP + H, :], w_ref[1],
                        preferred_element_type=jnp.float32)
    acc = acc + jnp.dot(xpad_ref[TOP + 1:TOP + 1 + H, :], w_ref[2],
                        preferred_element_type=jnp.float32)

    yq = acc.astype(y_ref.dtype)
    y_ref[0] = yq

    # Partial BN statistics on exactly the data that will be normalized (post cast),
    # stored as a single lane-dense row per image; reduced over (N, W) in the wrapper.
    yf = yq.astype(jnp.float32)
    sum_ref[0] = jnp.sum(yf, axis=0, keepdims=True)
    ssq_ref[0] = jnp.sum(yf * yf, axis=0, keepdims=True)


# ---------------------------------------------------------------------------
# pallas_call wrapper
# ---------------------------------------------------------------------------
def _conv_bn_stats(x_m, w_band, *, scale=None, bias=None, out_dtype=jnp.bfloat16):
    """x_m: (N, H, W*Cp_in) bf16 merged-lane layout.  Returns raw conv output
    (N, H, W*Cp_out) and per-image partial channel sum / sum-of-squares."""
    N, H, L_in = x_m.shape
    L_out = w_band.shape[-1]
    apply_affine = scale is not None

    if apply_affine:
        def kernel(x_ref, s_ref, b_ref, w_ref, y_ref, sum_ref, ssq_ref, xpad_ref):
            _conv_body(x_ref, w_ref, y_ref, sum_ref, ssq_ref, xpad_ref, s_ref, b_ref)
        extra_in = [scale.reshape(1, L_in).astype(jnp.float32),
                    bias.reshape(1, L_in).astype(jnp.float32)]
        extra_specs = [pl.BlockSpec((1, L_in), lambda n: (0, 0)),
                       pl.BlockSpec((1, L_in), lambda n: (0, 0))]
    else:  # conv1: no producer affine at all (review item: skip the x*1+0 pass)
        def kernel(x_ref, w_ref, y_ref, sum_ref, ssq_ref, xpad_ref):
            _conv_body(x_ref, w_ref, y_ref, sum_ref, ssq_ref, xpad_ref, None, None)
        extra_in, extra_specs = [], []

    y, psum, pssq = pl.pallas_call(
        kernel,
        out_shape=(
            jax.ShapeDtypeStruct((N, H, L_out), out_dtype),
            jax.ShapeDtypeStruct((N, 1, L_out), jnp.float32),
            jax.ShapeDtypeStruct((N, 1, L_out), jnp.float32),
        ),
        grid_spec=pltpu.PrefetchScalarGridSpec(
            num_scalar_prefetch=0,
            grid=(N,),
            in_specs=[pl.BlockSpec((1, H, L_in), lambda n: (n, 0, 0))] + extra_specs
                     + [pl.BlockSpec((3, L_in, L_out), lambda n: (0, 0, 0))],  # resident
            out_specs=[
                pl.BlockSpec((1, H, L_out), lambda n: (n, 0, 0)),
                pl.BlockSpec((1, 1, L_out), lambda n: (n, 0, 0)),
                pl.BlockSpec((1, 1, L_out), lambda n: (n, 0, 0)),
            ],
            scratch_shapes=[pltpu.VMEM((H + TOP + 1, L_in), jnp.bfloat16)],
        ),
        compiler_params=pltpu.CompilerParams(
            dimension_semantics=("parallel",)),  # partial stats -> no reduction axis
    )(x_m, *extra_in, w_band)
    return y, psum, pssq


# ---------------------------------------------------------------------------
# PlainBlock forward (training-mode BatchNorm semantics, dropout=False path)
# ---------------------------------------------------------------------------
def plain_block_forward(x_nchw, params, *, downsample=False, dropout=False):
    # TODO(synk): dropout=True path not implemented (module default is dropout=False).
    del dropout
    N, Cin, H, W = x_nchw.shape
    Cout = params["w1"].shape[0]

    cp_in = _choose_cp(Cin, W)
    cp_mid = _choose_cp(Cout, W)

    # NCHW -> merged-lane NHWC (N, H, W*Cp), bf16.
    x = jnp.transpose(x_nchw, (0, 2, 3, 1))
    x = jnp.pad(x, ((0, 0), (0, 0), (0, 0), (0, cp_in - Cin)))
    x_m = x.reshape(N, H, W * cp_in).astype(jnp.bfloat16)

    w1_band = _band_weight(params["w1"], W, cp_in, cp_mid)

    # conv1 (no producer affine) + per-image partial stats of its output.
    y1, p1s, p1q = _conv_bn_stats(x_m, w1_band, out_dtype=jnp.bfloat16)

    if downsample:
        # stride-2, pad=1, k=3 conv == stride-1 conv sampled at even output positions.
        H2, W2 = (H + 1) // 2, (W + 1) // 2
        y1s = y1.reshape(N, H, W, cp_mid)[:, ::2, ::2, :]
        y1f = y1s.astype(jnp.float32)
        m1 = jnp.mean(y1f, axis=(0, 1, 2))
        v1 = jnp.var(y1f, axis=(0, 1, 2))
        y1_m = y1s.reshape(N, H2, W2 * cp_mid)
    else:
        H2, W2 = H, W
        cnt1 = N * H * W
        csum = jnp.sum(p1s.reshape(N * W, cp_mid), axis=0)
        cssq = jnp.sum(p1q.reshape(N * W, cp_mid), axis=0)
        m1 = csum / cnt1
        v1 = jnp.maximum(cssq / cnt1 - m1 * m1, 0.0)   # guard f32 cancellation
        y1_m = y1

    g1, b1 = _pad_vec(params["g1"], cp_mid), _pad_vec(params["b1"], cp_mid)
    s1 = g1 / jnp.sqrt(v1 + EPS)
    t1 = b1 - m1 * s1
    s1_l = jnp.tile(s1, W2)                            # per-lane (w, c) scale/bias
    t1_l = jnp.tile(t1, W2)

    cp_out = _choose_cp(Cout, W2)
    w2_band = _band_weight(params["w2"], W2, cp_mid, cp_out)

    # conv2 with BN1 + ReLU fused into its input construction; raw output kept f32.
    y2, p2s, p2q = _conv_bn_stats(y1_m, w2_band, scale=s1_l, bias=t1_l,
                                  out_dtype=jnp.float32)

    cnt2 = N * H2 * W2
    csum2 = jnp.sum(p2s.reshape(N * W2, cp_out), axis=0)
    cssq2 = jnp.sum(p2q.reshape(N * W2, cp_out), axis=0)
    m2 = csum2 / cnt2
    v2 = jnp.maximum(cssq2 / cnt2 - m2 * m2, 0.0)
    g2, b2 = _pad_vec(params["g2"], cp_out), _pad_vec(params["b2"], cp_out)
    s2 = g2 / jnp.sqrt(v2 + EPS)
    t2 = b2 - m2 * s2

    # BN2 + channel slice + NHWC->NCHW as one fused plain-jnp epilogue (no extra
    # over-padded f32 HBM round trip through a second kernel).
    out = y2.reshape(N, H2, W2, cp_out) * s2 + t2
    out = out[..., :Cout]
    return jnp.transpose(out, (0, 3, 1, 2))


# ---------------------------------------------------------------------------
# Pure-JAX reference (for correctness check)
# ---------------------------------------------------------------------------
def _ref_forward(x, params, *, downsample=False):
    stride = 2 if downsample else 1

    def conv(x, w, s):
        return lax.conv_general_dilated(
            x, w, (s, s), ((1, 1), (1, 1)),
            dimension_numbers=("NCHW", "OIHW", "NCHW"))

    def bn(y, g, b):
        mean = jnp.mean(y, axis=(0, 2, 3), keepdims=True)
        var = jnp.var(y, axis=(0, 2, 3), keepdims=True)
        return (y - mean) / jnp.sqrt(var + EPS) * g.reshape(1, -1, 1, 1) \
               + b.reshape(1, -1, 1, 1)

    h = jnp.maximum(bn(conv(x, params["w1"], stride), params["g1"], params["b1"]), 0.0)
    return bn(conv(h, params["w2"], 1), params["g2"], params["b2"])


# ---------------------------------------------------------------------------
if __name__ == "__main__":
    key = jax.random.PRNGKey(0)
    ks = jax.random.split(key, 7)

    N, Cin, H, W = 2, 4, 16, 16
    Cout = 8
    downsample = False  # PlainBlock(Cin=4, Cout=8, downsample=False, dropout=False)

    x = jax.random.normal(ks[0], (N, Cin, H, W), jnp.float32)
    params = {
        "w1": jax.random.normal(ks[1], (Cout, Cin, 3, 3), jnp.float32) * 0.1,
        "g1": jax.random.uniform(ks[2], (Cout,), jnp.float32, 0.5, 1.5),
        "b1": jax.random.normal(ks[3], (Cout,), jnp.float32) * 0.1,
        "w2": jax.random.normal(ks[4], (Cout, Cout, 3, 3), jnp.float32) * 0.1,
        "g2": jax.random.uniform(ks[5], (Cout,), jnp.float32, 0.5, 1.5),
        "b2": jax.random.normal(ks[6], (Cout,), jnp.float32) * 0.1,
    }

    out = plain_block_forward(x, params, downsample=downsample)
    out = jax.block_until_ready(out)

    ref = _ref_forward(x, params, downsample=downsample)
    assert out.shape == (N, Cout, H, W), out.shape
    # bf16 MXU operands + bf16 intermediate activation -> bf16-appropriate tolerance.
    assert jnp.allclose(out, ref, atol=5e-2, rtol=5e-2), \
        float(jnp.max(jnp.abs(out - ref)))

    print("KERNEL_OK")
</pallas_src>

<mosaic_0001>
module attributes {stable_mosaic.version = 11 : i64} {
  func.func @kernel(%arg0: i32, %arg1: memref<1x16x128xbf16, #tpu.memory_space<vmem>>, %arg2: memref<3x128x128xbf16, #tpu.memory_space<vmem>>, %arg3: memref<1x16x128xbf16, #tpu.memory_space<vmem>>, %arg4: memref<1x1x128xf32, #tpu.memory_space<vmem>>, %arg5: memref<1x1x128xf32, #tpu.memory_space<vmem>>, %arg6: memref<25x128xbf16, #tpu.memory_space<vmem>>) attributes {dimension_semantics = [#tpu.dimension_semantics<parallel>], iteration_bounds = array<i64: 2>, scalar_prefetch = 0 : i64, scratch_operands = 1 : i64, tpu.core_type = #tpu.core_type<tc>, window_params = [{transform_indices = @transform_0, window_bounds = array<i64: 1, 16, 128>}, {pipeline_mode = #tpu.pipeline_mode<synchronous>, transform_indices = @transform_1, window_bounds = array<i64: 3, 128, 128>}, {transform_indices = @transform_2, window_bounds = array<i64: 1, 16, 128>}, {transform_indices = @transform_3, window_bounds = array<i64: 1, 1, 128>}, {transform_indices = @transform_4, window_bounds = array<i64: 1, 1, 128>}]} {
    %c0 = arith.constant 0 : index
    %c0_0 = arith.constant 0 : index
    %c0_1 = arith.constant 0 : index
    %0 = vector.load %arg1[%c0, %c0_0, %c0_1] : memref<1x16x128xbf16, #tpu.memory_space<vmem>>, vector<1x16x128xbf16>
    %1 = vector.shape_cast %0 : vector<1x16x128xbf16> to vector<16x128xbf16>
    %2 = arith.extf %1 : vector<16x128xbf16> to vector<16x128xf32>
    %cst = arith.constant 0.000000e+00 : bf16
    %3 = vector.broadcast %cst : bf16 to vector<1x128xbf16>
    %c7 = arith.constant 7 : index
    %c0_2 = arith.constant 0 : index
    %4 = vector.load %arg6[%c7, %c0_2] : memref<25x128xbf16, #tpu.memory_space<vmem>>, vector<1x128xbf16>
    tpu.vector_store %arg6[%c7, %c0_2], %3 {strides = array<i32>} : memref<25x128xbf16, #tpu.memory_space<vmem>>, vector<1x128xbf16>,
    %c24 = arith.constant 24 : index
    %c0_3 = arith.constant 0 : index
    %5 = vector.load %arg6[%c24, %c0_3] : memref<25x128xbf16, #tpu.memory_space<vmem>>, vector<1x128xbf16>
    tpu.vector_store %arg6[%c24, %c0_3], %3 {strides = array<i32>} : memref<25x128xbf16, #tpu.memory_space<vmem>>, vector<1x128xbf16>,
    %6 = arith.truncf %2 : vector<16x128xf32> to vector<16x128xbf16>
    %c8 = arith.constant 8 : index
    %c0_4 = arith.constant 0 : index
    %7 = vector.load %arg6[%c8, %c0_4] : memref<25x128xbf16, #tpu.memory_space<vmem>>, vector<16x128xbf16>
    tpu.vector_store %arg6[%c8, %c0_4], %6 {strides = array<i32>} : memref<25x128xbf16, #tpu.memory_space<vmem>>, vector<16x128xbf16>,
    %c7_5 = arith.constant 7 : index
    %c0_6 = arith.constant 0 : index
    %8 = vector.load %arg6[%c7_5, %c0_6] : memref<25x128xbf16, #tpu.memory_space<vmem>>, vector<16x128xbf16>
    %c0_7 = arith.constant 0 : index
    %c0_8 = arith.constant 0 : index
    %c0_9 = arith.constant 0 : index
    %9 = vector.load %arg2[%c0_7, %c0_8, %c0_9] : memref<3x128x128xbf16, #tpu.memory_space<vmem>>, vector<1x128x128xbf16>
    %10 = vector.shape_cast %9 : vector<1x128x128xbf16> to vector<128x128xbf16>
    %cst_10 = arith.constant dense<0.000000e+00> : vector<16x128xf32>
    %11 = tpu.matmul %8, %10, %cst_10 {dimension_numbers = #tpu.dot_dimension_numbers<[1], [0], [0], [1], [0, 0, 1, 1], [], []>} : vector<16x128xbf16>, vector<128x128xbf16>, vector<16x128xf32> -> vector<16x128xf32>
    %c8_11 = arith.constant 8 : index
    %c0_12 = arith.constant 0 : index
    %12 = vector.load %arg6[%c8_11, %c0_12] : memref<25x128xbf16, #tpu.memory_space<vmem>>, vector<16x128xbf16>
    %c1 = arith.constant 1 : index
    %c0_13 = arith.constant 0 : index
    %c0_14 = arith.constant 0 : index
    %13 = vector.load %arg2[%c1, %c0_13, %c0_14] : memref<3x128x128xbf16, #tpu.memory_space<vmem>>, vector<1x128x128xbf16>
    %14 = vector.shape_cast %13 : vector<1x128x128xbf16> to vector<128x128xbf16>
    %cst_15 = arith.constant dense<0.000000e+00> : vector<16x128xf32>
    %15 = tpu.matmul %12, %14, %cst_15 {dimension_numbers = #tpu.dot_dimension_numbers<[1], [0], [0], [1], [0, 0, 1, 1], [], []>} : vector<16x128xbf16>, vector<128x128xbf16>, vector<16x128xf32> -> vector<16x128xf32>
    %16 = arith.addf %11, %15 : vector<16x128xf32>
    %c9 = arith.constant 9 : index
    %c0_16 = arith.constant 0 : index
    %17 = vector.load %arg6[%c9, %c0_16] : memref<25x128xbf16, #tpu.memory_space<vmem>>, vector<16x128xbf16>
    %c2 = arith.constant 2 : index
    %c0_17 = arith.constant 0 : index
    %c0_18 = arith.constant 0 : index
    %18 = vector.load %arg2[%c2, %c0_17, %c0_18] : memref<3x128x128xbf16, #tpu.memory_space<vmem>>, vector<1x128x128xbf16>
    %19 = vector.shape_cast %18 : vector<1x128x128xbf16> to vector<128x128xbf16>
    %cst_19 = arith.constant dense<0.000000e+00> : vector<16x128xf32>
    %20 = tpu.matmul %17, %19, %cst_19 {dimension_numbers = #tpu.dot_dimension_numbers<[1], [0], [0], [1], [0, 0, 1, 1], [], []>} : vector<16x128xbf16>, vector<128x128xbf16>, vector<16x128xf32> -> vector<16x128xf32>
    %21 = arith.addf %16, %20 : vector<16x128xf32>
    %22 = arith.truncf %21 : vector<16x128xf32> to vector<16x128xbf16>
    %c0_20 = arith.constant 0 : index
    %c0_21 = arith.constant 0 : index
    %c0_22 = arith.constant 0 : index
    %23 = vector.load %arg3[%c0_20, %c0_21, %c0_22] : memref<1x16x128xbf16, #tpu.memory_space<vmem>>, vector<1x16x128xbf16>
    %24 = vector.shape_cast %23 : vector<1x16x128xbf16> to vector<16x128xbf16>
    %25 = vector.shape_cast %22 : vector<16x128xbf16> to vector<1x16x128xbf16>
    tpu.vector_store %arg3[%c0_20, %c0_21, %c0_22], %25 {strides = array<i32>} : memref<1x16x128xbf16, #tpu.memory_space<vmem>>, vector<1x16x128xbf16>,
    %26 = arith.extf %22 : vector<16x128xbf16> to vector<16x128xf32>
    %cst_23 = arith.constant dense<0.000000e+00> : vector<128xf32>
    %27 = vector.multi_reduction <add>, %26, %cst_23 [0] : vector<16x128xf32> to vector<128xf32>
    %28 = vector.shape_cast %27 : vector<128xf32> to vector<1x128xf32>
    %c0_24 = arith.constant 0 : index
    %c0_25 = arith.constant 0 : index
    %c0_26 = arith.constant 0 : index
    %29 = vector.load %arg4[%c0_24, %c0_25, %c0_26] : memref<1x1x128xf32, #tpu.memory_space<vmem>>, vector<1x1x128xf32>
    %30 = vector.shape_cast %29 : vector<1x1x128xf32> to vector<1x128xf32>
    %31 = vector.shape_cast %28 : vector<1x128xf32> to vector<1x1x128xf32>
    tpu.vector_store %arg4[%c0_24, %c0_25, %c0_26], %31 {strides = array<i32>} : memref<1x1x128xf32, #tpu.memory_space<vmem>>, vector<1x1x128xf32>,
    %32 = arith.mulf %26, %26 : vector<16x128xf32>
    %cst_27 = arith.constant dense<0.000000e+00> : vector<128xf32>
    %33 = vector.multi_reduction <add>, %32, %cst_27 [0] : vector<16x128xf32> to vector<128xf32>
    %34 = vector.shape_cast %33 : vector<128xf32> to vector<1x128xf32>
    %c0_28 = arith.constant 0 : index
    %c0_29 = arith.constant 0 : index
    %c0_30 = arith.constant 0 : index
    %35 = vector.load %arg5[%c0_28, %c0_29, %c0_30] : memref<1x1x128xf32, #tpu.memory_space<vmem>>, vector<1x1x128xf32>
    %36 = vector.shape_cast %35 : vector<1x1x128xf32> to vector<1x128xf32>
    %37 = vector.shape_cast %34 : vector<1x128xf32> to vector<1x1x128xf32>
    tpu.vector_store %arg5[%c0_28, %c0_29, %c0_30], %37 {strides = array<i32>} : memref<1x1x128xf32, #tpu.memory_space<vmem>>, vector<1x1x128xf32>,
    return
  }
  func.func @transform_0(%arg0: i32) -> (i32, i32, i32) {
    %c0_i32 = arith.constant 0 : i32
    %c0_i32_0 = arith.constant 0 : i32
    %c0_i32_1 = arith.constant 0 : i32
    return %arg0, %c0_i32, %c0_i32_0 : i32, i32, i32
  }
  func.func @transform_1(%arg0: i32) -> (i32, i32, i32) {
    %c0_i32 = arith.constant 0 : i32
    %c0_i32_0 = arith.constant 0 : i32
    %c0_i32_1 = arith.constant 0 : i32
    %c0_i32_2 = arith.constant 0 : i32
    return %c0_i32, %c0_i32_0, %c0_i32_1 : i32, i32, i32
  }
  func.func @transform_2(%arg0: i32) -> (i32, i32, i32) {
    %c0_i32 = arith.constant 0 : i32
    %c0_i32_0 = arith.constant 0 : i32
    %c0_i32_1 = arith.constant 0 : i32
    return %arg0, %c0_i32, %c0_i32_0 : i32, i32, i32
  }
  func.func @transform_3(%arg0: i32) -> (i32, i32, i32) {
    %c0_i32 = arith.constant 0 : i32
    %c0_i32_0 = arith.constant 0 : i32
    %c0_i32_1 = arith.constant 0 : i32
    return %arg0, %c0_i32, %c0_i32_0 : i32, i32, i32
  }
  func.func @transform_4(%arg0: i32) -> (i32, i32, i32) {
    %c0_i32 = arith.constant 0 : i32
    %c0_i32_0 = arith.constant 0 : i32
    %c0_i32_1 = arith.constant 0 : i32
    return %arg0, %c0_i32, %c0_i32_0 : i32, i32, i32
  }
}

</mosaic_0001>

<llo_original>
// kernel: tpu_custom_call.1
$region0: #{tpu_custom_call.1}
  #allocation0 [shape = 'u32[]', space=smem, size = 0x4, offset = 0x4, fixed_abs, tag = 'smem constant byte address 0x4 - core index']
  #allocation1 [shape = 'u32[144,128]{1,0:T(1,128)}', space=vmem, size = 0x12000, scoped, tag = 'internal scratch']
  #allocation2 [shape = 'bf16[25,128]{1,0:T(8,128)(2,1)}', space=vmem, size = 0x2000, scoped, tag = 'scratch operand']
  %s0 = inlined_call_operand.hbm [shape: bf16[2,16,128], index: 0, kind: input, shape index: {}]
  %s1 = inlined_call_operand.hbm [shape: bf16[3,128,128], index: 1, kind: input, shape index: {}]
  %s2 = inlined_call_operand.hbm [shape: bf16[2,16,128], index: 2, kind: output, shape index: {0}]
  %s3 = inlined_call_operand.hbm [shape: f32[2,1,128], index: 3, kind: output, shape index: {1}]
  %s4 = inlined_call_operand.hbm [shape: f32[2,1,128], index: 4, kind: output, shape index: {2}]
  %5 = xla_tuple %s2, %s3, %s4
  %s6 = sld [smem:[#allocation0]]
  $region65: #{tpu_custom_call.1} parent=0
    _
  %s8 = ssub.s32 1, %s6
  %s9 = scalar_select 0, %s8, %s6
  $region1: #{tpu_custom_call.1} parent=0
    #allocation3 [shape = 'u8[8192]{0}', space=vmem, size = 0x2000, scoped, tag = 'input window, operand 0']
    #allocation4 [shape = 's32[2]{0}', space=sflag, size = 0x8, scoped, tag = 'scoped memory for tpu_custom_call.1']
    #allocation5 [shape = 's32[2]{0}', space=sflag, size = 0x8, scoped, tag = 'scoped memory for tpu_custom_call.1']
    #allocation6 [shape = 'u8[98304]{0}', space=vmem, size = 0x18000, scoped, tag = 'input window, operand 1, single buffered']
    #allocation7 [shape = 's32[1]{0}', space=sflag, size = 0x4, scoped, tag = 'scoped memory for tpu_custom_call.1']
    #allocation8 [shape = 'u8[8192]{0}', space=vmem, size = 0x2000, scoped, tag = 'output window, operand 0']
    #allocation9 [shape = 'u8[1024]{0}', space=vmem, size = 0x400, scoped, tag = 'output window, operand 1']
    #allocation10 [shape = 's32[2]{0}', space=sflag, size = 0x8, scoped, tag = 'scoped memory for tpu_custom_call.1']
    #allocation11 [shape = 'u8[1024]{0}', space=vmem, size = 0x400, scoped, tag = 'output window, operand 2']
    %10 = vsyncpa [#allocation4], 0
    %s11 = scalar_lea.sflag [#allocation4], 1
    %12 = vsyncpa %s11, 0
    %13 = vsyncpa [#allocation7], 0
    %14 = vsyncpa [#allocation5], 0
    %s15 = scalar_lea.sflag [#allocation5], 1
    %16 = vsyncpa %s15, 0
    %17 = vsyncpa [#allocation10], 0
    %s18 = scalar_lea.sflag [#allocation10], 1
    %19 = vsyncpa %s18, 0
    loop: start=0, step=1, limit=4
    $region2: #{tpu_custom_call.1} parent=1 // loop_pre_header
      _
    $region3: #{tpu_custom_call.1} parent=1 // loop_header
      %s21 = sphi 0, %s25
      %p22 = scmp.ge.s32.totalorder %s21, 4
      %s31 = sphi 0, %s33
      %s34 = sphi 0, %s31
      %s35 = sphi 0, %s34
      %s51 = sphi 0, %s35
      %s55 = sphi 0, %s55
      %s57 = sphi 0, %s55
      %s58 = sphi 0, %s57
      %s72 = sphi 0, %s58
      %s78 = sphi 0, %s80
      %s81 = sphi 0, %s78
      %s82 = sphi 0, %s81
      %s98 = sphi 0, %s82
      %s104 = sphi 0, %s106
      %s107 = sphi 0, %s104
      %s108 = sphi 0, %s107
      %s124 = sphi 0, %s108
      %s130 = sphi 0, %s132
      %s133 = sphi 0, %s130
      %s134 = sphi 0, %s133
      %s150 = sphi 0, %s134
    $region4: #{tpu_custom_call.1} parent=1 // loop_header_branch
      %24 = sbr.rel (%p22) target = $region8
    $region5: #{tpu_custom_call.1} parent=1 // loop_body
      %s26 = ssub.s32 %s21, 1
      %s27 = ssub.s32 %s21, 2
      %s28 = sadd.s32 %s21, 1
      %s29 = ssub.s32 %s21, %s28
      %p30 = scmp.eq.s32.totalorder %s29, 0
      %s32 = sadd.s32 %s31, 1
      %s33 = scalar_select %p30, %s31, %s32
      %p36 = pneg %p30
      %p37 = scmp.eq.s32.totalorder %s21, 1
      %p38 = por %p36, %p37
      %p39 = scmp.ne.s32.totalorder %s31, %s34
      %p40 = scmp.eq.s32.totalorder %s21, 0
      %p41 = por %p39, %p40
      %p42 = scmp.ne.s32.totalorder %s31, %s34
      %p43 = scmp.eq.s32.totalorder %s26, 1
      %p44 = por %p42, %p43
      %p45 = scmp.ne.s32.totalorder %s34, %s35
      %p46 = scmp.eq.s32.totalorder %s26, 0
      %p47 = por %p45, %p46
      %p48 = scmp.ne.s32.totalorder %s34, %s35
      %p49 = scmp.eq.s32.totalorder %s27, 1
      %p50 = por %p48, %p49
      %p52 = scmp.ne.s32.totalorder %s35, %s51
      %p53 = scmp.eq.s32.totalorder %s27, 0
      %p54 = por %p52, %p53
      %s56 = sadd.s32 %s55, 1
      %p59 = scmp.eq.s32.totalorder %s21, 1
      %p60 = scmp.ne.s32.totalorder %s55, %s57
      %p61 = scmp.eq.s32.totalorder %s21, 0
      %p62 = por %p60, %p61
      %p63 = scmp.ne.s32.totalorder %s55, %s57
      %p64 = scmp.eq.s32.totalorder %s26, 1
      %p65 = por %p63, %p64
      %p66 = scmp.ne.s32.totalorder %s57, %s58
      %p67 = scmp.eq.s32.totalorder %s26, 0
      %p68 = por %p66, %p67
      %p69 = scmp.ne.s32.totalorder %s57, %s58
      %p70 = scmp.eq.s32.totalorder %s27, 1
      %p71 = por %p69, %p70
      %p73 = scmp.ne.s32.totalorder %s58, %s72
      %p74 = scmp.eq.s32.totalorder %s27, 0
      %p75 = por %p73, %p74
      %s76 = ssub.s32 %s21, %s28
      %p77 = scmp.eq.s32.totalorder %s76, 0
      %s79 = sadd.s32 %s78, 1
      %s80 = scalar_select %p77, %s78, %s79
      %p83 = pneg %p77
      %p84 = scmp.eq.s32.totalorder %s21, 1
      %p85 = por %p83, %p84
      %p86 = scmp.ne.s32.totalorder %s78, %s81
      %p87 = scmp.eq.s32.totalorder %s21, 0
      %p88 = por %p86, %p87
      %p89 = scmp.ne.s32.totalorder %s78, %s81
      %p90 = scmp.eq.s32.totalorder %s26, 1
      %p91 = por %p89, %p90
      %p92 = scmp.ne.s32.totalorder %s81, %s82
      %p93 = scmp.eq.s32.totalorder %s26, 0
      %p94 = por %p92, %p93
      %p95 = scmp.ne.s32.totalorder %s81, %s82
      %p96 = scmp.eq.s32.totalorder %s27, 1
      %p97 = por %p95, %p96
      %p99 = scmp.ne.s32.totalorder %s82, %s98
      %p100 = scmp.eq.s32.totalorder %s27, 0
      %p101 = por %p99, %p100
      %s102 = ssub.s32 %s21, %s28
      %p103 = scmp.eq.s32.totalorder %s102, 0
      %s105 = sadd.s32 %s104, 1
      %s106 = scalar_select %p103, %s104, %s105
      %p109 = pneg %p103
      %p110 = scmp.eq.s32.totalorder %s21, 1
      %p111 = por %p109, %p110
      %p112 = scmp.ne.s32.totalorder %s104, %s107
      %p113 = scmp.eq.s32.totalorder %s21, 0
      %p114 = por %p112, %p113
      %p115 = scmp.ne.s32.totalorder %s104, %s107
      %p116 = scmp.eq.s32.totalorder %s26, 1
      %p117 = por %p115, %p116
      %p118 = scmp.ne.s32.totalorder %s107, %s108
      %p119 = scmp.eq.s32.totalorder %s26, 0
      %p120 = por %p118, %p119
      %p121 = scmp.ne.s32.totalorder %s107, %s108
      %p122 = scmp.eq.s32.totalorder %s27, 1
      %p123 = por %p121, %p122
      %p125 = scmp.ne.s32.totalorder %s108, %s124
      %p126 = scmp.eq.s32.totalorder %s27, 0
      %p127 = por %p125, %p126
      %s128 = ssub.s32 %s21, %s28
      %p129 = scmp.eq.s32.totalorder %s128, 0
      %s131 = sadd.s32 %s130, 1
      %s132 = scalar_select %p129, %s130, %s131
      %p135 = pneg %p129
      %p136 = scmp.eq.s32.totalorder %s21, 1
      %p137 = por %p135, %p136
      %p138 = scmp.ne.s32.totalorder %s130, %s133
      %p139 = scmp.eq.s32.totalorder %s21, 0
      %p140 = por %p138, %p139
      %p141 = scmp.ne.s32.totalorder %s130, %s133
      %p142 = scmp.eq.s32.totalorder %s26, 1
      %p143 = por %p141, %p142
      %p144 = scmp.ne.s32.totalorder %s133, %s134
      %p145 = scmp.eq.s32.totalorder %s26, 0
      %p146 = por %p144, %p145
      %p147 = scmp.ne.s32.totalorder %s133, %s134
      %p148 = scmp.eq.s32.totalorder %s27, 1
      %p149 = por %p147, %p148
      %p151 = scmp.ne.s32.totalorder %s134, %s150
      %p152 = scmp.eq.s32.totalorder %s27, 0
      %p153 = por %p151, %p152
      %p154 = scmp.le.s32.totalorder 1, %s21
      %p155 = scmp.lt.s32.totalorder %s21, 3
      %p156 = pnand %p154, %p155
      %p157 = pneg %p156
      // Predicated region
      $region9: #{tpu_custom_call.1} parent=5 // pred_check
        _
      $region10: #{tpu_custom_call.1} parent=5 // pred_check_branch
        %159 = sbr.rel (%p156) target = $region12
      $region11: #{tpu_custom_call.1} parent=5 // pred_region
        %s160 = ssub.s32 %s21, 1
        // Predicated region
        $region13: #{tpu_custom_call.1} parent=11 // pred_check
          %p161 = pneg %p68
        $region14: #{tpu_custom_call.1} parent=11 // pred_check_branch
          %163 = sbr.rel (%p161) target = $region16
        $region15: #{tpu_custom_call.1} parent=11 // pred_region
          %s165 = ssub.s32 3072, 3072
          %166 = vsyncadd [#allocation7], %s165
          %s167 = sshll.u32 [#allocation6], 4
          %s168 = int_to_ptr.vmem [resolvable:$true] %s167
          %173 = dma.hbm_to_vmem [thread:$0]  %s1, 3072, %s168, [#allocation7], 64, 64, 4
        $region16: #{tpu_custom_call.1} parent=11 // pred_fallthru
          _
      $region12: #{tpu_custom_call.1} parent=5 // pred_fallthru
        _
      %p174 = scmp.lt.s32.totalorder %s21, 2
      // Predicated region
      $region17: #{tpu_custom_call.1} parent=5 // pred_check
        %p175 = pneg %p174
      $region18: #{tpu_custom_call.1} parent=5 // pred_check_branch
        %177 = sbr.rel (%p175) target = $region20
      $region19: #{tpu_custom_call.1} parent=5 // pred_region
        // Predicated region
        $region21: #{tpu_custom_call.1} parent=19 // pred_check
          %p178 = pneg %p41
        $region22: #{tpu_custom_call.1} parent=19 // pred_check_branch
          %180 = sbr.rel (%p178) target = $region24
        $region23: #{tpu_custom_call.1} parent=19 // pred_region
          %s181 = sand.u32 %s31, 1
          %s182 = scalar_lea.sflag [#allocation4], %s181
          %s183 = sand.u32 %s31, 1
          %s184 = smul.addr %s183, 8
          %s185 = scalar_lea.vmem [#allocation3], %s184
          %s187 = ssub.s32 128, 128
          %188 = vsyncadd %s182, %s187
          %s189 = smul.addr %s21, 2
          %s190 = smul.addr %s189, 64
          %s191 = scalar_lea.hbm %s0, %s190
          %s192 = sshll.u32 %s185, 4
          %s193 = int_to_ptr.vmem [resolvable:$true] %s192
          %198 = dma.hbm_to_vmem [thread:$0]  %s191, 128, %s193, %s182, 64, 64, 4
        $region24: #{tpu_custom_call.1} parent=19 // pred_fallthru
          _
      $region20: #{tpu_custom_call.1} parent=5 // pred_fallthru
        _
      %p199 = scmp.le.s32.totalorder 1, %s21
      %p200 = scmp.lt.s32.totalorder %s21, 3
      %p201 = pnand %p199, %p200
      %p202 = pneg %p201
      // Predicated region
      $region25: #{tpu_custom_call.1} parent=5 // pred_check
        _
      $region26: #{tpu_custom_call.1} parent=5 // pred_check_branch
        %204 = sbr.rel (%p201) target = $region28
      $region27: #{tpu_custom_call.1} parent=5 // pred_region
        %s205 = ssub.s32 %s21, 1
        %s206 = sand.u32 %s34, 1
        %s207 = scalar_lea.sflag [#allocation4], %s206
        %s208 = sand.u32 %s34, 1
        %s209 = smul.addr %s208, 8
        %s210 = scalar_lea.vmem [#allocation3], %s209
        // Predicated region
        $region29: #{tpu_custom_call.1} parent=27 // pred_check
          %p211 = pneg %p47
        $region30: #{tpu_custom_call.1} parent=27 // pred_check_branch
          %213 = sbr.rel (%p211) target = $region32
        $region31: #{tpu_custom_call.1} parent=27 // pred_region
          %214 = dma.done %s207, 128
        $region32: #{tpu_custom_call.1} parent=27 // pred_fallthru
          _
        // Predicated region
        $region33: #{tpu_custom_call.1} parent=27 // pred_check
          %p215 = pneg %p68
        $region34: #{tpu_custom_call.1} parent=27 // pred_check_branch
          %217 = sbr.rel (%p215) target = $region36
        $region35: #{tpu_custom_call.1} parent=27 // pred_region
          %218 = dma.done [#allocation7], 3072
        $region36: #{tpu_custom_call.1} parent=27 // pred_fallthru
          _
        %s219 = sand.u32 %s34, 1
        %s220 = scalar_lea.sflag [#allocation4], %s219
        %s221 = sand.u32 %s34, 1
        %s222 = smul.addr %s221, 8
        %s223 = scalar_lea.vmem [#allocation3], %s222
        %p224 = pneg %p47
        %p225 = pneg %p44
        %p226 = pneg %p68
        %p227 = pneg %p65
        %p228 = pneg %p94
        %p229 = pneg %p91
        %s230 = sand.u32 %s81, 1
        %s231 = scalar_lea.sflag [#allocation5], %s230
        %s232 = sand.u32 %s81, 1
        %s233 = smul.addr %s232, 8
        %s234 = scalar_lea.vmem [#allocation8], %s233
        %p235 = pneg %p120
        %p236 = pneg %p117
        %s237 = sand.u32 %s26, 1
        %s238 = scalar_lea.sflag [#allocation10], %s237
        %s239 = sand.u32 %s107, 1
        %s240 = scalar_lea.vmem [#allocation9], %s239
        %p241 = pneg %p146
        %p242 = pneg %p143
        %s243 = sand.u32 %s26, 1
        %s244 = scalar_lea.sflag [#allocation10], %s243
        %s245 = sand.u32 %s133, 1
        %s246 = scalar_lea.vmem [#allocation11], %s245
        %v248 = vld [vmem:[%s210] sm:$0xf]
        %v249 = vld [vmem:[%s210 + $0x4] sm:$0xf]
        %vm250 = vcmask 1043459
        %vm251 = vsmask.f32 7950
        %vm252 = vmand %vm250, %vm251
        %v253 = vld [vmem:[#allocation2] sm:$0x8]
        %v254 = vsel %vm252, 0, %v253
        %255 = vst [vmem:[#allocation2] sm:$0x8] %v254
        %vm256 = vcmask 1040384
        %vm257 = vsmask.f32 256
        %vm258 = vmand %vm256, %vm257
        %v259 = vld [vmem:[#allocation2 + $0xc] sm:$0x1]
        %v260 = vsel %vm258, 0, %v259
        %261 = vst [vmem:[#allocation2 + $0xc] sm:$0x1] %v260
        %262 = vst [vmem:[#allocation2 + $0x4] sm:$0xf] %v248
        %263 = vst [vmem:[#allocation2 + $0x8] sm:$0xf] %v249
        %v264 = vld [vmem:[#allocation2] sm:$0x8]
        %v265 = vld [vmem:[#allocation2 + $0x4] sm:$0xf]
        %v266 = vld [vmem:[#allocation2 + $0x8] sm:$0xf]
        %v267 = vld [vmem:[#allocation6] sm:$0xf]
        %v268 = vld [vmem:[#allocation6 + $0x4] sm:$0xf]
        %v269 = vld [vmem:[#allocation6 + $0x8] sm:$0xf]
        %v270 = vld [vmem:[#allocation6 + $0xc] sm:$0xf]
        %v271 = vld [vmem:[#allocation6 + $0x10] sm:$0xf]
        %v272 = vld [vmem:[#allocation6 + $0x14] sm:$0xf]
        %v273 = vld [vmem:[#allocation6 + $0x18] sm:$0xf]
        %v274 = vld [vmem:[#allocation6 + $0x1c] sm:$0xf]
        %v275 = vld [vmem:[#allocation6 + $0x20] sm:$0xf]
        %v276 = vld [vmem:[#allocation6 + $0x24] sm:$0xf]
        %v277 = vld [vmem:[#allocation6 + $0x28] sm:$0xf]
        %v278 = vld [vmem:[#allocation6 + $0x2c] sm:$0xf]
        %v279 = vld [vmem:[#allocation6 + $0x30] sm:$0xf]
        %v280 = vld [vmem:[#allocation6 + $0x34] sm:$0xf]
        %v281 = vld [vmem:[#allocation6 + $0x38] sm:$0xf]
        %v282 = vld [vmem:[#allocation6 + $0x3c] sm:$0xf]
        %s283 = scalar_lea.vmem [#allocation6], 64
        %v284 = vld [vmem:[%s283] sm:$0xf]
        %v285 = vld [vmem:[%s283 + $0x4] sm:$0xf]
        %v286 = vld [vmem:[%s283 + $0x8] sm:$0xf]
        %v287 = vld [vmem:[%s283 + $0xc] sm:$0xf]
        %v288 = vld [vmem:[%s283 + $0x10] sm:$0xf]
        %v289 = vld [vmem:[%s283 + $0x14] sm:$0xf]
        %v290 = vld [vmem:[%s283 + $0x18] sm:$0xf]
        %v291 = vld [vmem:[%s283 + $0x1c] sm:$0xf]
        %v292 = vld [vmem:[%s283 + $0x20] sm:$0xf]
        %v293 = vld [vmem:[%s283 + $0x24] sm:$0xf]
        %v294 = vld [vmem:[%s283 + $0x28] sm:$0xf]
        %v295 = vld [vmem:[%s283 + $0x2c] sm:$0xf]
        %v296 = vld [vmem:[%s283 + $0x30] sm:$0xf]
        %v297 = vld [vmem:[%s283 + $0x34] sm:$0xf]
        %v298 = vld [vmem:[%s283 + $0x38] sm:$0xf]
        %v299 = vld [vmem:[%s283 + $0x3c] sm:$0xf]
        %v302 = vunpack.c.l.b16 %v265
        %v303 = vunpack.c.l.b16 %v266
        %v304 = vpack.c.b16 %v303, %v302
        %v322 = vunpack.c.l.b16 %v284
        %v323 = vunpack.c.l.b16 %v285
        %v324 = vunpack.c.l.b16 %v286
        %v325 = vunpack.c.l.b16 %v287
        %v326 = vunpack.c.l.b16 %v288
        %v327 = vunpack.c.l.b16 %v289
        %v328 = vunpack.c.l.b16 %v290
        %v329 = vunpack.c.l.b16 %v291
        %v330 = vunpack.c.l.b16 %v292
        %v331 = vunpack.c.l.b16 %v293
        %v332 = vunpack.c.l.b16 %v294
        %v333 = vunpack.c.l.b16 %v295
        %v334 = vunpack.c.l.b16 %v296
        %v335 = vunpack.c.l.b16 %v297
        %v336 = vunpack.c.l.b16 %v298
        %v337 = vunpack.c.l.b16 %v299
        %v338 = vpack.c.b16 %v323, %v322
        %v339 = vpack.c.b16 %v325, %v324
        %v340 = vpack.c.b16 %v327, %v326
        %v341 = vpack.c.b16 %v329, %v328
        %v342 = vpack.c.b16 %v331, %v330
        %v343 = vpack.c.b16 %v333, %v332
        %v344 = vpack.c.b16 %v335, %v334
        %v345 = vpack.c.b16 %v337, %v336
        %354 = vmatprep.subr.bf16.mxu0 0
        %355 = vmatpush1.bf16.msra.mxu0 %v338
        %356 = vmatprep.subr.bf16.mxu0 0
        %357 = vmatpush1.bf16.msra.mxu0 %v339
        %358 = vmatprep.subr.bf16.mxu0 0
        %359 = vmatpush1.bf16.msra.mxu0 %v340
        %360 = vmatprep.subr.bf16.mxu0 0
        %361 = vmatpush1.bf16.msra.mxu0 %v341
        %362 = vmatprep.subr.bf16.mxu0 0
        %363 = vmatpush1.bf16.msra.mxu0 %v342
        %364 = vmatprep.subr.bf16.mxu0 0
        %365 = vmatpush1.bf16.msra.mxu0 %v343
        %366 = vmatprep.subr.bf16.mxu0 0
        %367 = vmatpush1.bf16.msra.mxu0 %v344
        %368 = vmatprep.subr.bf16.mxu0 0
        %369 = vmatpush1.bf16.msra.mxu0 %v345
        %370 = vmatprep.subr.bf16.mxu0 0
        %371 = vmatpush1.bf16.msra.mxu0 0
        %372 = vmatprep.subr.bf16.mxu0 0
        %373 = vmatpush1.bf16.msra.mxu0 0
        %374 = vmatprep.subr.bf16.mxu0 0
        %375 = vmatpush1.bf16.msra.mxu0 0
        %376 = vmatprep.subr.bf16.mxu0 0
        %377 = vmatpush1.bf16.msra.mxu0 0
        %378 = vmatprep.subr.bf16.mxu0 0
        %379 = vmatpush1.bf16.msra.mxu0 0
        %380 = vmatprep.subr.bf16.mxu0 0
        %381 = vmatpush1.bf16.msra.mxu0 0
        %382 = vmatprep.subr.bf16.mxu0 0
        %383 = vmatpush1.bf16.msra.mxu0 0
        %384 = vmatprep.subr.bf16.mxu0 0
        %385 = vmatpush1.bf16.msra.mxu0 0
        %386 = vmatprep.mubr.bf16.mxu0 0
        %387 = vmatmul.mubr.bf16.gmra.mrb[0].mxu0 %v304
        %v388 = vpop.f32.mrb[0].mxu0
        %v389 = vadd.f32 0.0, %v388
        %v390 = vpop.f32.mrb[0].mxu0
        %v391 = vpop.f32.mrb[0].mxu0
        %v392 = vadd.f32 0.0, %v391
        %v393 = vpop.f32.mrb[0].mxu0
        %394 = vdwg.mxu0
        %v396 = vunpack.c.l.b16 %v264
        %v397 = vpack.c.b16 %v302, %v396
        %v398 = vpack.c.b16 %v303, %v303
        %vm399 = vsmask.f32 4352
        %v401 = vshrl.u32 %v397, 16
        %v403 = vrot.slane %v401, 3
        %v404 = vshll.u32 %v397, 16
        %v406 = vrot.slane %v404, 4
        %v407 = vor.u32 %v403, %v406
        %v409 = vshrl.u32 %v398, 16
        %v411 = vrot.slane %v409, 3
        %v412 = vshll.u32 %v398, 16
        %v414 = vrot.slane %v412, 4
        %v415 = vor.u32 %v411, %v414
        %v416 = vsel %vm399, %v407, %v415
        %v434 = vunpack.c.l.b16 %v267
        %v435 = vunpack.c.l.b16 %v268
        %v436 = vunpack.c.l.b16 %v269
        %v437 = vunpack.c.l.b16 %v270
        %v438 = vunpack.c.l.b16 %v271
        %v439 = vunpack.c.l.b16 %v272
        %v440 = vunpack.c.l.b16 %v273
        %v441 = vunpack.c.l.b16 %v274
        %v442 = vunpack.c.l.b16 %v275
        %v443 = vunpack.c.l.b16 %v276
        %v444 = vunpack.c.l.b16 %v277
        %v445 = vunpack.c.l.b16 %v278
        %v446 = vunpack.c.l.b16 %v279
        %v447 = vunpack.c.l.b16 %v280
        %v448 = vunpack.c.l.b16 %v281
        %v449 = vunpack.c.l.b16 %v282
        %v450 = vpack.c.b16 %v435, %v434
        %v451 = vpack.c.b16 %v437, %v436
        %v452 = vpack.c.b16 %v439, %v438
        %v453 = vpack.c.b16 %v441, %v440
        %v454 = vpack.c.b16 %v443, %v442
        %v455 = vpack.c.b16 %v445, %v444
        %v456 = vpack.c.b16 %v447, %v446
        %v457 = vpack.c.b16 %v449, %v448
        %466 = vmatprep.subr.bf16.mxu0 0
        %467 = vmatpush1.bf16.msra.mxu0 %v450
        %468 = vmatprep.subr.bf16.mxu0 0
        %469 = vmatpush1.bf16.msra.mxu0 %v451
        %470 = vmatprep.subr.bf16.mxu0 0
        %471 = vmatpush1.bf16.msra.mxu0 %v452
        %472 = vmatprep.subr.bf16.mxu0 0
        %473 = vmatpush1.bf16.msra.mxu0 %v453
        %474 = vmatprep.subr.bf16.mxu0 0
        %475 = vmatpush1.bf16.msra.mxu0 %v454
        %476 = vmatprep.subr.bf16.mxu0 0
        %477 = vmatpush1.bf16.msra.mxu0 %v455
        %478 = vmatprep.subr.bf16.mxu0 0
        %479 = vmatpush1.bf16.msra.mxu0 %v456
        %480 = vmatprep.subr.bf16.mxu0 0
        %481 = vmatpush1.bf16.msra.mxu0 %v457
        %482 = vmatprep.subr.bf16.mxu0 0
        %483 = vmatpush1.bf16.msra.mxu0 0
        %484 = vmatprep.subr.bf16.mxu0 0
        %485 = vmatpush1.bf16.msra.mxu0 0
        %486 = vmatprep.subr.bf16.mxu0 0
        %487 = vmatpush1.bf16.msra.mxu0 0
        %488 = vmatprep.subr.bf16.mxu0 0
        %489 = vmatpush1.bf16.msra.mxu0 0
        %490 = vmatprep.subr.bf16.mxu0 0
        %491 = vmatpush1.bf16.msra.mxu0 0
        %492 = vmatprep.subr.bf16.mxu0 0
        %493 = vmatpush1.bf16.msra.mxu0 0
        %494 = vmatprep.subr.bf16.mxu0 0
        %495 = vmatpush1.bf16.msra.mxu0 0
        %496 = vmatprep.subr.bf16.mxu0 0
        %497 = vmatpush1.bf16.msra.mxu0 0
        %498 = vmatprep.mubr.bf16.mxu0 0
        %499 = vmatmul.mubr.bf16.gmra.mrb[0].mxu0 %v416
        %v500 = vpop.f32.mrb[0].mxu0
        %v501 = vadd.f32 %v389, %v500
        %v502 = vpop.f32.mrb[0].mxu0
        %v503 = vpop.f32.mrb[0].mxu0
        %v504 = vadd.f32 %v392, %v503
        %v505 = vpop.f32.mrb[0].mxu0
        %506 = vdwg.mxu0
        %v507 = vld [vmem:[#allocation2 + $0x4] sm:$0xf]
        %v508 = vld [vmem:[#allocation2 + $0x8] sm:$0xf]
        %v509 = vld [vmem:[#allocation2 + $0xc] sm:$0x1]
        %s510 = scalar_lea.vmem [#allocation6], 128
        %v511 = vld [vmem:[%s510] sm:$0xf]
        %v512 = vld [vmem:[%s510 + $0x4] sm:$0xf]
        %v513 = vld [vmem:[%s510 + $0x8] sm:$0xf]
        %v514 = vld [vmem:[%s510 + $0xc] sm:$0xf]
        %v515 = vld [vmem:[%s510 + $0x10] sm:$0xf]
        %v516 = vld [vmem:[%s510 + $0x14] sm:$0xf]
        %v517 = vld [vmem:[%s510 + $0x18] sm:$0xf]
        %v518 = vld [vmem:[%s510 + $0x1c] sm:$0xf]
        %v519 = vld [vmem:[%s510 + $0x20] sm:$0xf]
        %v520 = vld [vmem:[%s510 + $0x24] sm:$0xf]
        %v521 = vld [vmem:[%s510 + $0x28] sm:$0xf]
        %v522 = vld [vmem:[%s510 + $0x2c] sm:$0xf]
        %v523 = vld [vmem:[%s510 + $0x30] sm:$0xf]
        %v524 = vld [vmem:[%s510 + $0x34] sm:$0xf]
        %v525 = vld [vmem:[%s510 + $0x38] sm:$0xf]
        %v526 = vld [vmem:[%s510 + $0x3c] sm:$0xf]
        %v530 = vunpack.c.l.b16 %v507
        %v531 = vunpack.c.l.b16 %v508
        %v532 = vunpack.c.l.b16 %v509
        %v533 = vpack.c.b16 %v531, %v530
        %v534 = vpack.c.b16 %v532, %v532
        %vm535 = vsmask.f32 7424
        %v537 = vshrl.u32 %v533, 16
        %v539 = vshll.u32 %v533, 16
        %v541 = vrot.slane %v539, 1
        %v542 = vor.u32 %v537, %v541
        %v544 = vshll.u32 %v534, 16
        %v546 = vrot.slane %v544, 1
        %v547 = vsel %vm535, %v542, %v546
        %v565 = vunpack.c.l.b16 %v511
        %v566 = vunpack.c.l.b16 %v512
        %v567 = vunpack.c.l.b16 %v513
        %v568 = vunpack.c.l.b16 %v514
        %v569 = vunpack.c.l.b16 %v515
        %v570 = vunpack.c.l.b16 %v516
        %v571 = vunpack.c.l.b16 %v517
        %v572 = vunpack.c.l.b16 %v518
        %v573 = vunpack.c.l.b16 %v519
        %v574 = vunpack.c.l.b16 %v520
        %v575 = vunpack.c.l.b16 %v521
        %v576 = vunpack.c.l.b16 %v522
        %v577 = vunpack.c.l.b16 %v523
        %v578 = vunpack.c.l.b16 %v524
        %v579 = vunpack.c.l.b16 %v525
        %v580 = vunpack.c.l.b16 %v526
        %v581 = vpack.c.b16 %v566, %v565
        %v582 = vpack.c.b16 %v568, %v567
        %v583 = vpack.c.b16 %v570, %v569
        %v584 = vpack.c.b16 %v572, %v571
        %v585 = vpack.c.b16 %v574, %v573
        %v586 = vpack.c.b16 %v576, %v575
        %v587 = vpack.c.b16 %v578, %v577
        %v588 = vpack.c.b16 %v580, %v579
        %597 = vmatprep.subr.bf16.mxu0 0
        %598 = vmatpush1.bf16.msra.mxu0 %v581
        %599 = vmatprep.subr.bf16.mxu0 0
        %600 = vmatpush1.bf16.msra.mxu0 %v582
        %601 = vmatprep.subr.bf16.mxu0 0
        %602 = vmatpush1.bf16.msra.mxu0 %v583
        %603 = vmatprep.subr.bf16.mxu0 0
        %604 = vmatpush1.bf16.msra.mxu0 %v584
        %605 = vmatprep.subr.bf16.mxu0 0
        %606 = vmatpush1.bf16.msra.mxu0 %v585
        %607 = vmatprep.subr.bf16.mxu0 0
        %608 = vmatpush1.bf16.msra.mxu0 %v586
        %609 = vmatprep.subr.bf16.mxu0 0
        %610 = vmatpush1.bf16.msra.mxu0 %v587
        %611 = vmatprep.subr.bf16.mxu0 0
        %612 = vmatpush1.bf16.msra.mxu0 %v588
        %613 = vmatprep.subr.bf16.mxu0 0
        %614 = vmatpush1.bf16.msra.mxu0 0
        %615 = vmatprep.subr.bf16.mxu0 0
        %616 = vmatpush1.bf16.msra.mxu0 0
        %617 = vmatprep.subr.bf16.mxu0 0
        %618 = vmatpush1.bf16.msra.mxu0 0
        %619 = vmatprep.subr.bf16.mxu0 0
        %620 = vmatpush1.bf16.msra.mxu0 0
        %621 = vmatprep.subr.bf16.mxu0 0
        %622 = vmatpush1.bf16.msra.mxu0 0
        %623 = vmatprep.subr.bf16.mxu0 0
        %624 = vmatpush1.bf16.msra.mxu0 0
        %625 = vmatprep.subr.bf16.mxu0 0
        %626 = vmatpush1.bf16.msra.mxu0 0
        %627 = vmatprep.subr.bf16.mxu0 0
        %628 = vmatpush1.bf16.msra.mxu0 0
        %629 = vmatprep.mubr.bf16.mxu0 0
        %630 = vmatmul.mubr.bf16.gmra.mrb[0].mxu0 %v547
        %v631 = vpop.f32.mrb[0].mxu0
        %v632 = vadd.f32 0.0, %v631
        %v633 = vpop.f32.mrb[0].mxu0
        %v634 = vpop.f32.mrb[0].mxu0
        %v635 = vadd.f32 0.0, %v634
        %v636 = vpop.f32.mrb[0].mxu0
        %637 = vdwg.mxu0
        %v638 = vadd.f32 %v501, %v632
        %v639 = vadd.f32 %v504, %v635
        %v640 = vpack.c.bf16 %v639, %v638
        %v642 = vunpack.c.l.b16 %v640
        %v643 = vunpack.c.h.b16 %v640
        %v644 = vpack.c.b16 %v642, %v642
        %v645 = vpack.c.b16 %v643, %v643
        %648 = vst [vmem:[%s234] sm:$0xf] %v644
        %649 = vst [vmem:[%s234 + $0x4] sm:$0xf] %v645
        %v650 = vunpack.c.l.bf16 %v640
        %v651 = vunpack.c.h.bf16 %v640
        %v652 = vadd.f32 %v650, %v651
        %v653 = vrot.slane %v652, 4
        %v654 = vadd.f32 %v652, %v653
        %v655 = vrot.slane %v654, 2
        %v656 = vadd.f32 %v654, %v655
        %v657 = vrot.slane %v656, 1
        %v658 = vadd.f32 %v656, %v657
        %659 = vst [vmem:[%s240] sm:$0x1] %v658
        %v660 = vmul.f32 %v650, %v650
        %v661 = vmul.f32 %v651, %v651
        %v662 = vadd.f32 %v660, %v661
        %v663 = vrot.slane %v662, 4
        %v664 = vadd.f32 %v662, %v663
        %v665 = vrot.slane %v664, 2
        %v666 = vadd.f32 %v664, %v665
        %v667 = vrot.slane %v666, 1
        %v668 = vadd.f32 %v666, %v667
        %669 = vst [vmem:[%s246] sm:$0x1] %v668
        %s670 = sand.u32 %s81, 1
        %s671 = scalar_lea.sflag [#allocation5], %s670
        %s672 = sand.u32 %s81, 1
        %s673 = smul.addr %s672, 8
        %s674 = scalar_lea.vmem [#allocation8], %s673
        %s675 = sand.u32 %s26, 1
        %s676 = scalar_lea.sflag [#allocation10], %s675
        %s677 = sand.u32 %s107, 1
        %s678 = scalar_lea.vmem [#allocation9], %s677
        %s679 = sand.u32 %s26, 1
        %s680 = scalar_lea.sflag [#allocation10], %s679
        %s681 = sand.u32 %s133, 1
        %s682 = scalar_lea.vmem [#allocation11], %s681
        // Predicated region
        $region37: #{tpu_custom_call.1} parent=27 // pred_check
          %p683 = pneg %p91
        $region38: #{tpu_custom_call.1} parent=27 // pred_check_branch
          %685 = sbr.rel (%p683) target = $region40
        $region39: #{tpu_custom_call.1} parent=27 // pred_region
          %s687 = ssub.s32 128, 128
          %688 = vsyncadd %s671, %s687
          %s689 = smul.addr %s26, 2
          %s690 = smul.addr %s689, 64
          %s691 = scalar_lea.hbm %s2, %s690
          %s692 = sshll.u32 %s674, 4
          %s693 = int_to_ptr.vmem [resolvable:$true] %s692
          %698 = dma.vmem_to_hbm [thread:$0]  %s693, 128, %s691, %s671, 64, 64, 4
        $region40: #{tpu_custom_call.1} parent=27 // pred_fallthru
          _
        // Predicated region
        $region41: #{tpu_custom_call.1} parent=27 // pred_check
          %p699 = pneg %p117
        $region42: #{tpu_custom_call.1} parent=27 // pred_check_branch
          %701 = sbr.rel (%p699) target = $region44
        $region43: #{tpu_custom_call.1} parent=27 // pred_region
          %s703 = ssub.s32 16, 16
          %704 = vsyncadd %s676, %s703
          %s705 = smul.addr %s26, 16
          %s706 = scalar_lea.hbm %s3, %s705
          %s708 = sshll.u32 %s678, 4
          %s709 = int_to_ptr.vmem [resolvable:$true] %s708
          %711 = dma.vmem_to_hbm [thread:$0]  %s709, 16, %s706, %s676
        $region44: #{tpu_custom_call.1} parent=27 // pred_fallthru
          _
        // Predicated region
        $region45: #{tpu_custom_call.1} parent=27 // pred_check
          %p712 = pneg %p143
        $region46: #{tpu_custom_call.1} parent=27 // pred_check_branch
          %714 = sbr.rel (%p712) target = $region48
        $region47: #{tpu_custom_call.1} parent=27 // pred_region
          %s716 = ssub.s32 16, 16
          %717 = vsyncadd %s680, %s716
          %s718 = smul.addr %s26, 16
          %s719 = scalar_lea.hbm %s4, %s718
          %s721 = sshll.u32 %s682, 4
          %s722 = int_to_ptr.vmem [resolvable:$true] %s721
          %724 = dma.vmem_to_hbm [thread:$0]  %s722, 16, %s719, %s680
        $region48: #{tpu_custom_call.1} parent=27 // pred_fallthru
          _
      $region28: #{tpu_custom_call.1} parent=5 // pred_fallthru
        _
      %p725 = scmp.le.s32.totalorder 2, %s21
      // Predicated region
      $region49: #{tpu_custom_call.1} parent=5 // pred_check
        %p726 = pneg %p725
      $region50: #{tpu_custom_call.1} parent=5 // pred_check_branch
        %728 = sbr.rel (%p726) target = $region52
      $region51: #{tpu_custom_call.1} parent=5 // pred_region
        %s729 = ssub.s32 %s21, 2
        // Predicated region
        $region53: #{tpu_custom_call.1} parent=51 // pred_check
          %p730 = pneg %p97
        $region54: #{tpu_custom_call.1} parent=51 // pred_check_branch
          %732 = sbr.rel (%p730) target = $region56
        $region55: #{tpu_custom_call.1} parent=51 // pred_region
          %s733 = sand.u32 %s82, 1
          %s734 = scalar_lea.sflag [#allocation5], %s733
          %s735 = sand.u32 %s82, 1
          %s736 = smul.addr %s735, 8
          %s737 = scalar_lea.vmem [#allocation8], %s736
          %738 = dma.done %s734, 128
        $region56: #{tpu_custom_call.1} parent=51 // pred_fallthru
          _
        // Predicated region
        $region57: #{tpu_custom_call.1} parent=51 // pred_check
          %p739 = pneg %p123
        $region58: #{tpu_custom_call.1} parent=51 // pred_check_branch
          %741 = sbr.rel (%p739) target = $region60
        $region59: #{tpu_custom_call.1} parent=51 // pred_region
          %s742 = sand.u32 %s27, 1
          %s743 = scalar_lea.sflag [#allocation10], %s742
          %s744 = sand.u32 %s108, 1
          %s745 = scalar_lea.vmem [#allocation9], %s744
          %746 = dma.done %s743, 16
        $region60: #{tpu_custom_call.1} parent=51 // pred_fallthru
          _
        // Predicated region
        $region61: #{tpu_custom_call.1} parent=51 // pred_check
          %p747 = pneg %p149
        $region62: #{tpu_custom_call.1} parent=51 // pred_check_branch
          %749 = sbr.rel (%p747) target = $region64
        $region63: #{tpu_custom_call.1} parent=51 // pred_region
          %s750 = sand.u32 %s27, 1
          %s751 = scalar_lea.sflag [#allocation10], %s750
          %s752 = sand.u32 %s134, 1
          %s753 = scalar_lea.vmem [#allocation11], %s752
          %754 = dma.done %s751, 16
        $region64: #{tpu_custom_call.1} parent=51 // pred_fallthru
          _
      $region52: #{tpu_custom_call.1} parent=5 // pred_fallthru
        _
    $region6: #{tpu_custom_call.1} parent=1 // loop_footer
      %s25 = sadd.s32 1, %s21
    $region7: #{tpu_custom_call.1} parent=1 // loop_footer_branch
      %20 = sbr.rel target = $region3
    $region8: #{tpu_custom_call.1} parent=1 // loop_exit
      _
    %755 = vsyncpa [#allocation4], 1
    %s756 = scalar_lea.sflag [#allocation4], 1
    %757 = vsyncpa %s756, 1
    %758 = vsyncpa [#allocation7], 1
    %759 = vsyncpa [#allocation5], 1
    %s760 = scalar_lea.sflag [#allocation5], 1
    %761 = vsyncpa %s760, 1
    %762 = vsyncpa [#allocation10], 1
    %s763 = scalar_lea.sflag [#allocation10], 1
    %764 = vsyncpa %s763, 1

</llo_original>
